<compile_context>
chip_gen: v7x
topology: tpu7x:2x2x1
jax: 0.10.0
libtpu: 0.0.40
codegen_flags: <defaults>
</compile_context>

<pallas_src>
import functools

import jax
import jax.numpy as jnp
from jax.experimental import pallas as pl
from jax.experimental.pallas import tpu as pltpu


def _layernorm_kernel(*refs, eps, n, center, scale):
    x_ref = refs[0]
    o_ref = refs[-1]
    idx = 1
    scale_ref = None
    center_ref = None
    if scale:
        scale_ref = refs[idx]
        idx += 1
    if center:
        center_ref = refs[idx]
        idx += 1

    # Reductions always in f32.
    x = x_ref[...].astype(jnp.float32)                 # (tm, F)
    n_f = jnp.float32(n)
    mean = jnp.sum(x, axis=-1, keepdims=True) / n_f
    d = x - mean
    # Two-pass (numerically safe) unbiased variance, torch .std() default.
    var = jnp.sum(d * d, axis=-1, keepdims=True) / jnp.float32(n - 1)
    std = jnp.sqrt(var)
    inv = pl.reciprocal(std + jnp.float32(eps), approx=False)

    # Elementwise normalize/affine in the I/O dtype when it is sub-32-bit
    # (bf16 VALU on v6e/v7x; halves the temporary footprint everywhere).
    cd = jnp.float32 if jnp.dtype(o_ref.dtype).itemsize >= 4 else o_ref.dtype
    out = d.astype(cd) * inv.astype(cd)
    if scale:
        out = out * scale_ref[...].astype(cd)          # broadcast (1, F)
    if center:
        out = out + center_ref[...].astype(cd)         # broadcast (1, F)

    o_ref[...] = out.astype(o_ref.dtype)


def _vmem_capacity_bytes():
    try:
        return int(pltpu.get_tpu_info().vmem_capacity_bytes)
    except Exception:
        return 64 * 1024 * 1024        # conservative (v7x per-TC VMEM)


def _choose_tm(batch, f, dtype, vmem_budget_bytes):
    itemsize = jnp.dtype(dtype).itemsize
    sublane = max(8, 32 // itemsize)   # 8 f32, 16 bf16, 32 int8/fp8
    # Pipelined footprint per row: 2 input bufs + 2 output bufs (I/O dtype)
    # + ~3 f32-wide live temporaries inside the body (conservative).
    bytes_per_row = f * (4 * itemsize + 3 * 4)
    tm = vmem_budget_bytes // max(bytes_per_row, 1)
    # Keep >= ~4 grid steps when the batch allows it: engages the
    # double-buffer pipeline and lets v7x shard the axis over its 2 TCs.
    if batch >= 4 * sublane:
        tm = min(tm, -(-batch // 4))
    tm = min(int(tm), 1024, batch if batch >= sublane else sublane)
    tm = max(sublane, (tm // sublane) * sublane)
    return tm, bytes_per_row


def layer_norm(x, scale_param=None, center_param=None, *, center=True,
               scale=False, eps=1e-6, vmem_budget_bytes=20 * 1024 * 1024):
    """Pallas TPU LayerNorm. x: (B, F); params: (F,)."""
    B, F = x.shape
    assert F >= 2, "unbiased std needs at least 2 features"

    cap = _vmem_capacity_bytes()
    # <= 3/8 of physical VMEM for this kernel (24 MiB on v7x, 48 MiB on v5e/v6e).
    budget = min(int(vmem_budget_bytes), max(8 * 1024 * 1024, cap * 3 // 8))
    tm, bytes_per_row = _choose_tm(B, F, x.dtype, budget)
    grid_m = pl.cdiv(B, tm)

    args = [x]
    in_specs = [pl.BlockSpec((tm, F), lambda i: (i, 0))]
    if scale:
        args.append(scale_param.reshape(1, F))
        in_specs.append(pl.BlockSpec((1, F), lambda i: (0, 0)))
    if center:
        args.append(center_param.reshape(1, F))
        in_specs.append(pl.BlockSpec((1, F), lambda i: (0, 0)))

    kernel = functools.partial(_layernorm_kernel, eps=eps, n=F, center=center,
                               scale=scale)

    itemsize = jnp.dtype(x.dtype).itemsize
    cost = pl.CostEstimate(flops=6 * B * F, transcendentals=2 * B,
                           bytes_accessed=2 * B * F * itemsize)

    footprint = tm * bytes_per_row
    vmem_limit = int(min(max(16 * 1024 * 1024, footprint * 3 // 2),
                         cap * 7 // 8))

    return pl.pallas_call(
        kernel,
        out_shape=jax.ShapeDtypeStruct((B, F), x.dtype),
        grid_spec=pl.GridSpec(
            grid=(grid_m,),
            in_specs=in_specs,
            out_specs=pl.BlockSpec((tm, F), lambda i: (i, 0)),
        ),
        compiler_params=pltpu.CompilerParams(
            dimension_semantics=("parallel",),
            vmem_limit_bytes=vmem_limit,
        ),
        cost_estimate=cost,
    )(*args)


def layer_norm_ref(x, scale_param, center_param, *, center=True, scale=False,
                   eps=1e-6):
    mean = jnp.mean(x, axis=-1, keepdims=True)
    std = jnp.std(x, axis=-1, keepdims=True, ddof=1)   # torch unbiased std
    out = (x - mean) / (std + eps)
    if scale:
        out = out * scale_param
    if center:
        out = out + center_param
    return out


if __name__ == "__main__":
    key = jax.random.PRNGKey(0)
    k1, k2 = jax.random.split(key)

    # Deterministic parameter init, exactly as the module's __init__:
    #   scale_param = ones(features)   (only used if scale=True)
    #   center_param = zeros(features) (only used if center=True)
    B, F = 8, 32
    x = jax.random.normal(k1, (B, F), dtype=jnp.float32)
    scale_param = jnp.ones((F,), dtype=jnp.float32)
    center_param = jnp.zeros((F,), dtype=jnp.float32)

    # 1) Module defaults: center=True, scale=False, eps=1e-6
    out = jax.block_until_ready(
        layer_norm(x, scale_param, center_param,
                   center=True, scale=False, eps=1e-6))
    ref = layer_norm_ref(x, scale_param, center_param,
                         center=True, scale=False, eps=1e-6)
    assert out.shape == (B, F) and out.dtype == x.dtype
    assert jnp.allclose(out, ref, atol=1e-5, rtol=1e-5), "mismatch (center only)"

    # 2) Both affine branches enabled (exercises the conditional param inputs).
    out2 = jax.block_until_ready(
        layer_norm(x, scale_param, center_param,
                   center=True, scale=True, eps=1e-6))
    ref2 = layer_norm_ref(x, scale_param, center_param,
                          center=True, scale=True, eps=1e-6)
    assert jnp.allclose(out2, ref2, atol=1e-5, rtol=1e-5), "mismatch (scale+center)"

    # 3) Ragged batch (B not multiple of the 8-row tile) and F % 128 != 0:
    #    exercises Pallas's edge-block clipping and masked lane stores.
    B3, F3 = 20, 48
    x3 = jax.random.normal(k2, (B3, F3), dtype=jnp.float32)
    s3 = jnp.ones((F3,), jnp.float32)
    c3 = jnp.zeros((F3,), jnp.float32)
    out3 = jax.block_until_ready(
        layer_norm(x3, s3, c3, center=True, scale=False, eps=1e-6))
    ref3 = layer_norm_ref(x3, s3, c3, center=True, scale=False, eps=1e-6)
    assert out3.shape == (B3, F3)
    assert jnp.allclose(out3, ref3, atol=1e-5, rtol=1e-5), "mismatch (ragged)"

    print("KERNEL_OK")
</pallas_src>

<mosaic_0001>
module attributes {stable_mosaic.version = 11 : i64} {
  func.func @_layernorm_kernel(%arg0: i32, %arg1: memref<8x32xf32, #tpu.memory_space<vmem>>, %arg2: memref<1x32xf32, #tpu.memory_space<vmem>>, %arg3: memref<8x32xf32, #tpu.memory_space<vmem>>) attributes {dimension_semantics = [#tpu.dimension_semantics<parallel>], iteration_bounds = array<i64: 1>, scalar_prefetch = 0 : i64, scratch_operands = 0 : i64, tpu.core_type = #tpu.core_type<tc>, window_params = [{transform_indices = @transform_0, window_bounds = array<i64: 8, 32>}, {pipeline_mode = #tpu.pipeline_mode<synchronous>, transform_indices = @transform_1, window_bounds = array<i64: 1, 32>}, {transform_indices = @transform_2, window_bounds = array<i64: 8, 32>}]} {
    %c0 = arith.constant 0 : index
    %c0_0 = arith.constant 0 : index
    %0 = vector.load %arg1[%c0, %c0_0] : memref<8x32xf32, #tpu.memory_space<vmem>>, vector<8x32xf32>
    %cst = arith.constant dense<0.000000e+00> : vector<8xf32>
    %1 = vector.multi_reduction <add>, %0, %cst [1] : vector<8x32xf32> to vector<8xf32>
    %2 = vector.shape_cast %1 : vector<8xf32> to vector<8x1xf32>
    %cst_1 = arith.constant 3.200000e+01 : f32
    %3 = vector.broadcast %cst_1 : f32 to vector<8x1xf32>
    %4 = arith.divf %2, %3 : vector<8x1xf32>
    %5 = vector.broadcast %4 : vector<8x1xf32> to vector<8x32xf32>
    %6 = arith.subf %0, %5 : vector<8x32xf32>
    %7 = arith.mulf %6, %6 : vector<8x32xf32>
    %cst_2 = arith.constant dense<0.000000e+00> : vector<8xf32>
    %8 = vector.multi_reduction <add>, %7, %cst_2 [1] : vector<8x32xf32> to vector<8xf32>
    %9 = vector.shape_cast %8 : vector<8xf32> to vector<8x1xf32>
    %cst_3 = arith.constant 3.100000e+01 : f32
    %10 = vector.broadcast %cst_3 : f32 to vector<8x1xf32>
    %11 = arith.divf %9, %10 : vector<8x1xf32>
    %12 = math.sqrt %11 : vector<8x1xf32>
    %cst_4 = arith.constant 9.99999997E-7 : f32
    %13 = vector.broadcast %cst_4 : f32 to vector<8x1xf32>
    %14 = arith.addf %12, %13 : vector<8x1xf32>
    %15 = tpu.reciprocal %14 : vector<8x1xf32> -> vector<8x1xf32>
    %16 = vector.broadcast %15 : vector<8x1xf32> to vector<8x32xf32>
    %17 = arith.mulf %6, %16 : vector<8x32xf32>
    %c0_5 = arith.constant 0 : index
    %c0_6 = arith.constant 0 : index
    %18 = vector.load %arg2[%c0_5, %c0_6] : memref<1x32xf32, #tpu.memory_space<vmem>>, vector<1x32xf32>
    %19 = vector.broadcast %18 : vector<1x32xf32> to vector<8x32xf32>
    %20 = arith.addf %17, %19 : vector<8x32xf32>
    %c0_7 = arith.constant 0 : index
    %c0_8 = arith.constant 0 : index
    %21 = vector.load %arg3[%c0_7, %c0_8] : memref<8x32xf32, #tpu.memory_space<vmem>>, vector<8x32xf32>
    tpu.vector_store %arg3[%c0_7, %c0_8], %20 {strides = array<i32>} : memref<8x32xf32, #tpu.memory_space<vmem>>, vector<8x32xf32>,
    return
  }
  func.func @transform_0(%arg0: i32) -> (i32, i32) {
    %c0_i32 = arith.constant 0 : i32
    %c0_i32_0 = arith.constant 0 : i32
    return %arg0, %c0_i32 : i32, i32
  }
  func.func @transform_1(%arg0: i32) -> (i32, i32) {
    %c0_i32 = arith.constant 0 : i32
    %c0_i32_0 = arith.constant 0 : i32
    %c0_i32_1 = arith.constant 0 : i32
    return %c0_i32, %c0_i32_0 : i32, i32
  }
  func.func @transform_2(%arg0: i32) -> (i32, i32) {
    %c0_i32 = arith.constant 0 : i32
    %c0_i32_0 = arith.constant 0 : i32
    return %arg0, %c0_i32 : i32, i32
  }
}

</mosaic_0001>

<llo_original>
// kernel: tpu_custom_call.1
$region0: #{tpu_custom_call.1}
  #allocation0 [shape = 'u32[]', space=smem, size = 0x4, offset = 0x4, fixed_abs, tag = 'smem constant byte address 0x4 - core index']
  #allocation1 [shape = 'u32[144,128]{1,0:T(1,128)}', space=vmem, size = 0x12000, scoped, tag = 'internal scratch']
  %s0 = inlined_call_operand.hbm [shape: f32[8,32], index: 0, kind: input, shape index: {}]
  %s1 = inlined_call_operand.vmem [shape: f32[1,32], index: 1, kind: input, shape index: {}]
  %s2 = inlined_call_operand.hbm [shape: f32[8,32], index: 2, kind: output, shape index: {}]
  %s3 = sld [smem:[#allocation0]]
  $region22: #{tpu_custom_call.1} parent=0
    _
  %s5 = ssub.s32 1, %s3
  %s6 = scalar_select 0, %s5, %s3
  $region1: #{tpu_custom_call.1} parent=0
    #allocation2 [shape = 'u8[4096]{0}', space=vmem, size = 0x1000, scoped, tag = 'input window, operand 0, single buffered']
    #allocation3 [shape = 's32[1]{0}', space=sflag, size = 0x4, scoped, tag = 'scoped memory for tpu_custom_call.1']
    #allocation4 [shape = 's32[1]{0}', space=sflag, size = 0x4, scoped, tag = 'scoped memory for tpu_custom_call.1']
    #allocation5 [shape = 'u8[4096]{0}', space=vmem, size = 0x1000, scoped, tag = 'output window, operand 0, single buffered']
    %7 = vsyncpa [#allocation3], 0
    %8 = vsyncpa [#allocation4], 0
    // Predicated region
    $region2: #{tpu_custom_call.1} parent=1 // pred_check
      _
    $region3: #{tpu_custom_call.1} parent=1 // pred_check_branch
      %10 = sbr.rel (0) target = $region5
    $region4: #{tpu_custom_call.1} parent=1 // pred_region
      %s12 = ssub.s32 128, 128
      %13 = vsyncadd [#allocation3], %s12
      %s15 = sshll.u32 [#allocation2], 4
      %s16 = int_to_ptr.vmem [resolvable:$true] %s15
      %18 = dma.hbm_to_vmem [thread:$0]  %s0, 128, %s16, [#allocation3]
    $region5: #{tpu_custom_call.1} parent=1 // pred_fallthru
      _
    // Predicated region
    $region6: #{tpu_custom_call.1} parent=1 // pred_check
      _
    $region7: #{tpu_custom_call.1} parent=1 // pred_check_branch
      %20 = sbr.rel (0) target = $region9
    $region8: #{tpu_custom_call.1} parent=1 // pred_region
      _
    $region9: #{tpu_custom_call.1} parent=1 // pred_fallthru
      _
    // Predicated region
    $region10: #{tpu_custom_call.1} parent=1 // pred_check
      _
    $region11: #{tpu_custom_call.1} parent=1 // pred_check_branch
      %22 = sbr.rel (0) target = $region13
    $region12: #{tpu_custom_call.1} parent=1 // pred_region
      %23 = dma.done [#allocation3], 128
    $region13: #{tpu_custom_call.1} parent=1 // pred_fallthru
      _
    %v24 = vld [vmem:[#allocation2] sm:$0xff]
    %vm25 = vcmask 261120
    %v26 = vsel %vm25, %v24, 0.0
    %27 = vadd.xlane.f32.xlu0 %v26
    %v28 = vpop.xlane.xlu0 %27
    %v29 = vrcp.pop 32.0
    %v30 = vmul.f32 %v28, %v29
    %v31 = vsub.f32 %v24, %v30
    %v32 = vmul.f32 %v31, %v31
    %v33 = vsel %vm25, %v32, 0.0
    %34 = vadd.xlane.f32.xlu0 %v33
    %v35 = vpop.xlane.xlu0 %34
    %v36 = vrcp.pop 31.0
    %v37 = vmul.f32 %v35, %v36
    %v38 = vrsqrt.pop %v37
    %v39 = vmul.f32 %v37, %v38
    %vm40 = vcmp.eq.f32.partialorder %v37, inf
    %v41 = vsel %vm40, %v37, %v39
    %vm42 = vcmp.eq.f32.partialorder %v37, 0.0
    %v43 = vand.u32 %v37, 2147483648
    %v44 = vsel %vm42, %v43, %v41
    %v45 = vadd.f32 %v44, 1e-06
    %v46 = vrcp.pop %v45
    %v47 = vmul.f32 %v31, %v46
    %v48 = vld [vmem:[%s1] sm:$0x1]
    %v50 = vlaneseq
    %v51 = vshrl.u32 %v50, 7
    %v52 = vsub.s32 0, %v51
    %v53 = vrot.slane %v48, %v52
    %v55 = vadd.f32 %v47, %v53
    %56 = vst.msk [vmem:[#allocation5] sm:$0xff] %vm25, %v55
    // Predicated region
    $region14: #{tpu_custom_call.1} parent=1 // pred_check
      _
    $region15: #{tpu_custom_call.1} parent=1 // pred_check_branch
      %58 = sbr.rel (0) target = $region17
    $region16: #{tpu_custom_call.1} parent=1 // pred_region
      %s60 = ssub.s32 128, 128
      %61 = vsyncadd [#allocation4], %s60
      %s63 = sshll.u32 [#allocation5], 4
      %s64 = int_to_ptr.vmem [resolvable:$true] %s63
      %66 = dma.vmem_to_hbm [thread:$0]  %s64, 128, %s2, [#allocation4]
    $region17: #{tpu_custom_call.1} parent=1 // pred_fallthru
      _
    // Predicated region
    $region18: #{tpu_custom_call.1} parent=1 // pred_check
      _
    $region19: #{tpu_custom_call.1} parent=1 // pred_check_branch
      %68 = sbr.rel (0) target = $region21
    $region20: #{tpu_custom_call.1} parent=1 // pred_region
      %69 = dma.done [#allocation4], 128
    $region21: #{tpu_custom_call.1} parent=1 // pred_fallthru
      _
    %70 = vsyncpa [#allocation3], 1
    %71 = vsyncpa [#allocation4], 1

</llo_original>
